<compile_context>
chip_gen: v6e
topology: v6e:2x2x1
jax: 0.10.0
libtpu: 0.0.40
codegen_flags: <defaults>
</compile_context>

<pallas_src>
import functools

import jax
import jax.numpy as jnp
import numpy as np
from jax.experimental import pallas as pl
from jax.experimental.pallas import tpu as pltpu

RHO = 1e-6


def _codir_train_kernel(x_ref, w1_ref, b1_ref, w2_ref, b2_ref,
                        cls_ref, env_ref, expc_ref, rfve_ref,
                        out_ref, partial_ref, *, compute_dtype):
    i = pl.program_id(1)   # inner ("arbitrary") batch-tile index within this parallel slice

    # Zero this slice's partial-sum accumulator (resident output block) at the start of the slice.
    @pl.when(i == 0)
    def _init():
        partial_ref[...] = jnp.zeros_like(partial_ref)

    # ---- forward_network_pass: startnet + emd_layer on the MXU (bf16 operands, f32 accumulation) ----
    xb = x_ref[...].astype(compute_dtype)
    feat = jnp.dot(xb, w1_ref[...], preferred_element_type=jnp.float32) + b1_ref[...]
    out = jnp.dot(feat.astype(compute_dtype), w2_ref[...],
                  preferred_element_type=jnp.float32) + b2_ref[...]
    out_ref[...] = out.astype(out_ref.dtype)                   # logits tile (tb, n_c*n_e)

    # ---- get_masks_for_backprop, fused: tiny matmuls against constant binary expanders ----
    # mask_class[b, c*n_e+e] = gt_class[b, c];  mask_env[b, c*n_e+e] = (gt_env @ rfv)[b, e]
    # (one-hot x {0,1} expander with f32 accumulation -> exact even in bf16).
    mask_class = jnp.dot(cls_ref[...].astype(compute_dtype), expc_ref[...],
                         preferred_element_type=jnp.float32)
    mask_env = jnp.dot(env_ref[...].astype(compute_dtype), rfve_ref[...],
                       preferred_element_type=jnp.float32)

    # ---- compute_emd (fisher): batch sums for this tile ----
    # Masks are binary, so (out*m)^2 == (out*out)*m -> square once.
    out2 = out * out
    stacked = jnp.concatenate(
        [out * mask_env, out2 * mask_env, out * mask_class, out2 * mask_class], axis=1)
    # Batch reduction on the MXU (ones matmul) instead of four sublane reduces; the 8 identical
    # result rows keep the accumulator update a full, unmasked (8, 4*d_out) store.
    ones8 = jnp.ones((8, stacked.shape[0]), jnp.float32)
    partial_ref[...] += jnp.dot(ones8, stacked, preferred_element_type=jnp.float32)


@functools.partial(jax.jit, static_argnames=(
    "n_c", "n_e", "rho", "batch_tile", "num_parallel", "use_bf16", "logits_dtype"))
def codir_forward_train(x, w1, b1_row, w2, b2_row,
                        gt_class_1h, gt_env_1h, expand_c, rfv_exp, lam,
                        *, n_c, n_e, rho=RHO, batch_tile=512, num_parallel=2,
                        use_bf16=True, logits_dtype=jnp.float32):
    """Fused CoDiR train-mode forward: logits + E_P_f/E_Q_f partial sums in one pallas_call;
    the tiny fisher finalize (means/constraint/loss) runs as a few (d_out,) XLA ops."""
    B, d_in = x.shape
    feat_dim = w1.shape[1]
    n_l = gt_env_1h.shape[1]
    d_out = n_c * n_e

    tb = min(batch_tile, B)
    assert B % tb == 0, "batch must be divisible by the batch tile"
    assert tb == B or tb % 8 == 0, "batch tile must be sublane (8) aligned"
    nb = B // tb

    # Parallel (megacore) split of the batch-tile loop: largest divisor of nb that is <= num_parallel.
    n_par = max(1, min(num_parallel, nb))
    while nb % n_par:
        n_par -= 1
    nb_inner = nb // n_par

    compute_dtype = jnp.bfloat16 if use_bf16 else jnp.float32
    # Matmul operands live in the compute dtype (in a real training loop, store them this way once).
    w1c = w1.astype(compute_dtype)
    w2c = w2.astype(compute_dtype)
    expc = expand_c.astype(compute_dtype)
    rfve = rfv_exp.astype(compute_dtype)

    kern = functools.partial(_codir_train_kernel, compute_dtype=compute_dtype)

    # VMEM budget per generation: <= 3/4 of physical VMEM (96 MiB on v5e/v6e, 48 MiB on v7x).
    try:
        vmem_cap = int(pltpu.get_tpu_info().vmem_capacity_bytes)
    except Exception:
        vmem_cap = 64 * 1024 * 1024
    vmem_limit = int(min(96 * 1024 * 1024, (vmem_cap * 3) // 4))

    wbytes = 2 if use_bf16 else 4
    flops = int(2 * B * (d_in * feat_dim + feat_dim * d_out + (n_c + n_l) * d_out + 8 * 4 * d_out)
                + 7 * B * d_out)
    bytes_accessed = int(4 * B * (d_in + n_c + n_l)
                         + wbytes * (d_in * feat_dim + feat_dim * d_out + (n_c + n_l) * d_out)
                         + 4 * (feat_dim + d_out)
                         + np.dtype(logits_dtype).itemsize * B * d_out
                         + 4 * n_par * 8 * 4 * d_out)

    def const_spec(shape):
        # Grid-invariant operands: constant index map -> DMA'd once, stay resident in VMEM.
        return pl.BlockSpec(shape, lambda p, i: (0, 0))

    def batch_spec(shape):
        return pl.BlockSpec(shape, lambda p, i: (p * nb_inner + i, 0))

    logits, partials = pl.pallas_call(
        kern,
        out_shape=(
            jax.ShapeDtypeStruct((B, d_out), logits_dtype),             # logits
            jax.ShapeDtypeStruct((n_par, 8, 4 * d_out), jnp.float32),   # per-slice partial sums
        ),
        grid_spec=pltpu.PrefetchScalarGridSpec(
            num_scalar_prefetch=0,
            grid=(n_par, nb_inner),
            in_specs=[
                batch_spec((tb, d_in)),          # x             (batch-tiled)
                const_spec((d_in, feat_dim)),    # W1
                const_spec((1, feat_dim)),       # b1
                const_spec((feat_dim, d_out)),   # W2
                const_spec((1, d_out)),          # b2
                batch_spec((tb, n_c)),           # one-hot class (batch-tiled)
                batch_spec((tb, n_l)),           # one-hot env   (batch-tiled)
                const_spec((n_c, d_out)),        # expand_c
                const_spec((n_l, d_out)),        # rfv tiled over classes
            ],
            out_specs=(
                batch_spec((tb, d_out)),                                   # logits tile
                pl.BlockSpec((None, 8, 4 * d_out), lambda p, i: (p, 0, 0)),  # slice accumulator
            ),
        ),
        compiler_params=pltpu.CompilerParams(
            dimension_semantics=("parallel", "arbitrary"),
            vmem_limit_bytes=vmem_limit,
        ),
        cost_estimate=pl.CostEstimate(flops=flops, transcendentals=0,
                                      bytes_accessed=bytes_accessed),
    )(x, w1c, b1_row, w2c, b2_row, gt_class_1h, gt_env_1h, expc, rfve)

    # ---- finalize (tiny, wrapper-side): combine per-slice sums -> means -> fisher loss ----
    sums = jnp.sum(partials[:, 0, :], axis=0).reshape(4, d_out)   # rows: [P, P^2, Q, Q^2]
    inv_b = 1.0 / float(B)
    e_p_f = sums[0] * inv_b
    e_p_f2 = sums[1] * inv_b
    e_q_f = sums[2] * inv_b
    e_q_f2 = sums[3] * inv_b
    constraint = 1.0 - (0.5 * e_p_f2 + 0.5 * e_q_f2)
    loss = jnp.sum(e_p_f - e_q_f + lam * constraint - (rho * 0.5) * constraint * constraint)
    return {"loss": loss, "E_P_f": e_p_f, "E_Q_f": e_q_f, "out": logits}


def codir_forward_train_ref(x, w1, b1, w2, b2, gt_class_1h, gt_env_1h, rfv, lam,
                            *, n_c, n_e, rho=RHO, matmul_dtype=jnp.float32):
    """Pure-JAX reference mirroring the torch module's math (optionally with bf16 matmul casts)."""
    if matmul_dtype == jnp.float32:
        def mm(a, b):
            return jnp.dot(a, b, precision=jax.lax.Precision.HIGHEST)
    else:
        def mm(a, b):
            return jnp.dot(a.astype(matmul_dtype), b.astype(matmul_dtype),
                           preferred_element_type=jnp.float32)
    feat = mm(x, w1) + b1
    out = mm(feat, w2) + b2
    mask_class = jnp.repeat(gt_class_1h, n_e, axis=1)
    mask_env = jnp.tile(jnp.dot(gt_env_1h, rfv), (1, n_c))
    out_p = out * mask_env
    out_q = out * mask_class
    e_p_f = jnp.mean(out_p, axis=0)
    e_p_f2 = jnp.mean(out_p * out_p, axis=0)
    e_q_f = jnp.mean(out_q, axis=0)
    e_q_f2 = jnp.mean(out_q * out_q, axis=0)
    constraint = 1.0 - (0.5 * e_p_f2 + 0.5 * e_q_f2)
    loss = jnp.sum(e_p_f - e_q_f + lam * constraint - rho / 2.0 * constraint ** 2)
    return {"loss": loss, "E_P_f": e_p_f, "E_Q_f": e_q_f, "out": out}


if __name__ == "__main__":
    # Small shapes consistent with the module's __init__.
    B = 256          # batch (large enough to exercise the 2-D grid + parallel slices)
    input_dim = 32
    feature_dim = 64
    n_c = 4          # number of classes
    n_e = 32         # number of random features
    n_l = 8          # number of environment labels
    R = 3            # max doc size for random feature vec

    key = jax.random.PRNGKey(0)
    ks = jax.random.split(key, 8)

    # Deterministic synthetic parameters (weights stored as (in, out)).
    x = jax.random.normal(ks[0], (B, input_dim), dtype=jnp.float32)
    w1 = jax.random.normal(ks[1], (input_dim, feature_dim), dtype=jnp.float32) * 0.1
    b1 = jax.random.normal(ks[2], (feature_dim,), dtype=jnp.float32) * 0.01
    w2 = jax.random.normal(ks[3], (feature_dim, n_c * n_e), dtype=jnp.float32) * 0.1
    b2 = jax.random.normal(ks[4], (n_c * n_e,), dtype=jnp.float32) * 0.01
    lam = jnp.zeros((n_c * n_e,), dtype=jnp.float32)   # self.Lambda initialized to zeros

    # Targets as one-hot tensors (target['class']['tensor'], target['environment']['tensor']).
    class_idx = jax.random.randint(ks[5], (B,), 0, n_c)
    env_idx = jax.random.randint(ks[6], (B,), 0, n_l)
    gt_class_1h = jax.nn.one_hot(class_idx, n_c, dtype=jnp.float32)
    gt_env_1h = jax.nn.one_hot(env_idx, n_l, dtype=jnp.float32)

    # create_random_feature_vec: sparse binary (n_l, n_e) matrix, deterministic here (host-side, once).
    rfv_np = np.zeros((n_l, n_e), dtype=np.float32)
    rng = np.random.RandomState(0)
    for i in range(n_e):
        for _ in range(rng.randint(1, R + 1)):
            rfv_np[rng.randint(0, n_l), i] = 1.0
    rfv = jnp.asarray(rfv_np)

    # One-time model constants so the mask expansion runs inside the kernel:
    #   mask_class = gt_class_1h @ expand_c ;  mask_env = gt_env_1h @ rfv_exp
    expand_c = jnp.asarray(np.kron(np.eye(n_c, dtype=np.float32),
                                   np.ones((1, n_e), dtype=np.float32)))       # (n_c, n_c*n_e)
    rfv_exp = jnp.asarray(np.tile(rfv_np, (1, n_c)))                            # (n_l, n_c*n_e)

    # Params stored once in the (1, N) layout the kernel consumes.
    b1_row = b1.reshape(1, -1)
    b2_row = b2.reshape(1, -1)

    # TODO(synk): stateful bookkeeping (templates, thresholds, f1 accumulators) and the
    # 'templates'/'eval'/'features' modes are host-side training-loop state, not kernel compute.

    # --- run 1: bf16 matmul path with a multi-tile grid and 2 parallel slices -----------------
    res_bf16 = codir_forward_train(x, w1, b1_row, w2, b2_row,
                                   gt_class_1h, gt_env_1h, expand_c, rfv_exp, lam,
                                   n_c=n_c, n_e=n_e, batch_tile=64, num_parallel=2,
                                   use_bf16=True)
    jax.block_until_ready(res_bf16["loss"])
    ref_bf16 = codir_forward_train_ref(x, w1, b1, w2, b2, gt_class_1h, gt_env_1h, rfv, lam,
                                       n_c=n_c, n_e=n_e, matmul_dtype=jnp.bfloat16)
    np.testing.assert_allclose(np.asarray(res_bf16["out"]), np.asarray(ref_bf16["out"]),
                               rtol=1e-3, atol=1e-3)
    np.testing.assert_allclose(np.asarray(res_bf16["E_P_f"]), np.asarray(ref_bf16["E_P_f"]),
                               rtol=1e-3, atol=1e-5)
    np.testing.assert_allclose(np.asarray(res_bf16["E_Q_f"]), np.asarray(ref_bf16["E_Q_f"]),
                               rtol=1e-3, atol=1e-5)
    np.testing.assert_allclose(float(res_bf16["loss"]), float(ref_bf16["loss"]),
                               rtol=1e-3, atol=1e-3)

    # --- run 2: pure-f32 path with the default (single large) batch tile ----------------------
    res_f32 = codir_forward_train(x, w1, b1_row, w2, b2_row,
                                  gt_class_1h, gt_env_1h, expand_c, rfv_exp, lam,
                                  n_c=n_c, n_e=n_e, use_bf16=False)
    jax.block_until_ready(res_f32["loss"])
    ref_f32 = codir_forward_train_ref(x, w1, b1, w2, b2, gt_class_1h, gt_env_1h, rfv, lam,
                                      n_c=n_c, n_e=n_e, matmul_dtype=jnp.float32)
    # Tolerances allow for possible MXU f32 pass-count differences vs XLA HIGHEST-precision dots.
    np.testing.assert_allclose(np.asarray(res_f32["out"]), np.asarray(ref_f32["out"]),
                               rtol=1e-2, atol=1e-2)
    np.testing.assert_allclose(np.asarray(res_f32["E_P_f"]), np.asarray(ref_f32["E_P_f"]),
                               rtol=1e-2, atol=1e-3)
    np.testing.assert_allclose(np.asarray(res_f32["E_Q_f"]), np.asarray(ref_f32["E_Q_f"]),
                               rtol=1e-2, atol=1e-3)
    np.testing.assert_allclose(float(res_f32["loss"]), float(ref_f32["loss"]),
                               rtol=2e-2, atol=2e-2)

    print("KERNEL_OK")
</pallas_src>

<mosaic_0001>
module attributes {stable_mosaic.version = 11 : i64} {
  func.func @_codir_train_kernel(%arg0: i32, %arg1: i32, %arg2: memref<64x32xf32, #tpu.memory_space<vmem>>, %arg3: memref<32x64xbf16, #tpu.memory_space<vmem>>, %arg4: memref<1x64xf32, #tpu.memory_space<vmem>>, %arg5: memref<64x128xbf16, #tpu.memory_space<vmem>>, %arg6: memref<1x128xf32, #tpu.memory_space<vmem>>, %arg7: memref<64x4xf32, #tpu.memory_space<vmem>>, %arg8: memref<64x8xf32, #tpu.memory_space<vmem>>, %arg9: memref<4x128xbf16, #tpu.memory_space<vmem>>, %arg10: memref<8x128xbf16, #tpu.memory_space<vmem>>, %arg11: memref<64x128xf32, #tpu.memory_space<vmem>>, %arg12: memref<1x8x512xf32, #tpu.memory_space<vmem>>) attributes {dimension_semantics = [#tpu.dimension_semantics<parallel>, #tpu.dimension_semantics<arbitrary>], iteration_bounds = array<i64: 2, 2>, scalar_prefetch = 0 : i64, scratch_operands = 0 : i64, tpu.core_type = #tpu.core_type<tc>, window_params = [{transform_indices = @transform_0, window_bounds = array<i64: 64, 32>}, {pipeline_mode = #tpu.pipeline_mode<synchronous>, transform_indices = @transform_1, window_bounds = array<i64: 32, 64>}, {pipeline_mode = #tpu.pipeline_mode<synchronous>, transform_indices = @transform_2, window_bounds = array<i64: 1, 64>}, {pipeline_mode = #tpu.pipeline_mode<synchronous>, transform_indices = @transform_3, window_bounds = array<i64: 64, 128>}, {pipeline_mode = #tpu.pipeline_mode<synchronous>, transform_indices = @transform_4, window_bounds = array<i64: 1, 128>}, {transform_indices = @transform_5, window_bounds = array<i64: 64, 4>}, {transform_indices = @transform_6, window_bounds = array<i64: 64, 8>}, {pipeline_mode = #tpu.pipeline_mode<synchronous>, transform_indices = @transform_7, window_bounds = array<i64: 4, 128>}, {pipeline_mode = #tpu.pipeline_mode<synchronous>, transform_indices = @transform_8, window_bounds = array<i64: 8, 128>}, {transform_indices = @transform_9, window_bounds = array<i64: 64, 128>}, {transform_indices = @transform_10, window_bounds = array<i64: 1, 8, 512>}]} {
    %c0_i32 = arith.constant 0 : i32
    %0 = arith.cmpi eq, %arg1, %c0_i32 : i32
    %1 = arith.extui %0 : i1 to i32
    %c0_i32_0 = arith.constant 0 : i32
    %2 = arith.cmpi ne, %1, %c0_i32_0 : i32
    scf.if %2 {
      %cst_31 = arith.constant 0.000000e+00 : f32
      %39 = vector.broadcast %cst_31 : f32 to vector<8x512xf32>
      %c0_32 = arith.constant 0 : index
      %c0_33 = arith.constant 0 : index
      %c0_34 = arith.constant 0 : index
      %40 = vector.load %arg12[%c0_32, %c0_33, %c0_34] : memref<1x8x512xf32, #tpu.memory_space<vmem>>, vector<1x8x512xf32>
      %41 = vector.shape_cast %40 : vector<1x8x512xf32> to vector<8x512xf32>
      %42 = vector.shape_cast %39 : vector<8x512xf32> to vector<1x8x512xf32>
      tpu.vector_store %arg12[%c0_32, %c0_33, %c0_34], %42 {strides = array<i32>} : memref<1x8x512xf32, #tpu.memory_space<vmem>>, vector<1x8x512xf32>,
    } else {
    }
    %c0 = arith.constant 0 : index
    %c0_1 = arith.constant 0 : index
    %3 = vector.load %arg2[%c0, %c0_1] : memref<64x32xf32, #tpu.memory_space<vmem>>, vector<64x32xf32>
    %4 = arith.truncf %3 : vector<64x32xf32> to vector<64x32xbf16>
    %c0_2 = arith.constant 0 : index
    %c0_3 = arith.constant 0 : index
    %5 = vector.load %arg3[%c0_2, %c0_3] : memref<32x64xbf16, #tpu.memory_space<vmem>>, vector<32x64xbf16>
    %cst = arith.constant dense<0.000000e+00> : vector<64x64xf32>
    %6 = tpu.matmul %4, %5, %cst {dimension_numbers = #tpu.dot_dimension_numbers<[1], [0], [0], [1], [0, 0, 1, 1], [], []>} : vector<64x32xbf16>, vector<32x64xbf16>, vector<64x64xf32> -> vector<64x64xf32>
    %c0_4 = arith.constant 0 : index
    %c0_5 = arith.constant 0 : index
    %7 = vector.load %arg4[%c0_4, %c0_5] : memref<1x64xf32, #tpu.memory_space<vmem>>, vector<1x64xf32>
    %8 = vector.broadcast %7 : vector<1x64xf32> to vector<64x64xf32>
    %9 = arith.addf %6, %8 : vector<64x64xf32>
    %10 = arith.truncf %9 : vector<64x64xf32> to vector<64x64xbf16>
    %c0_6 = arith.constant 0 : index
    %c0_7 = arith.constant 0 : index
    %11 = vector.load %arg5[%c0_6, %c0_7] : memref<64x128xbf16, #tpu.memory_space<vmem>>, vector<64x128xbf16>
    %cst_8 = arith.constant dense<0.000000e+00> : vector<64x128xf32>
    %12 = tpu.matmul %10, %11, %cst_8 {dimension_numbers = #tpu.dot_dimension_numbers<[1], [0], [0], [1], [0, 0, 1, 1], [], []>} : vector<64x64xbf16>, vector<64x128xbf16>, vector<64x128xf32> -> vector<64x128xf32>
    %c0_9 = arith.constant 0 : index
    %c0_10 = arith.constant 0 : index
    %13 = vector.load %arg6[%c0_9, %c0_10] : memref<1x128xf32, #tpu.memory_space<vmem>>, vector<1x128xf32>
    %14 = vector.broadcast %13 : vector<1x128xf32> to vector<64x128xf32>
    %15 = arith.addf %12, %14 : vector<64x128xf32>
    %c0_11 = arith.constant 0 : index
    %c0_12 = arith.constant 0 : index
    %16 = vector.load %arg11[%c0_11, %c0_12] : memref<64x128xf32, #tpu.memory_space<vmem>>, vector<64x128xf32>
    tpu.vector_store %arg11[%c0_11, %c0_12], %15 {strides = array<i32>} : memref<64x128xf32, #tpu.memory_space<vmem>>, vector<64x128xf32>,
    %c0_13 = arith.constant 0 : index
    %c0_14 = arith.constant 0 : index
    %17 = vector.load %arg7[%c0_13, %c0_14] : memref<64x4xf32, #tpu.memory_space<vmem>>, vector<64x4xf32>
    %18 = arith.truncf %17 : vector<64x4xf32> to vector<64x4xbf16>
    %c0_15 = arith.constant 0 : index
    %c0_16 = arith.constant 0 : index
    %19 = vector.load %arg9[%c0_15, %c0_16] : memref<4x128xbf16, #tpu.memory_space<vmem>>, vector<4x128xbf16>
    %cst_17 = arith.constant dense<0.000000e+00> : vector<64x128xf32>
    %20 = tpu.matmul %18, %19, %cst_17 {dimension_numbers = #tpu.dot_dimension_numbers<[1], [0], [0], [1], [0, 0, 1, 1], [], []>} : vector<64x4xbf16>, vector<4x128xbf16>, vector<64x128xf32> -> vector<64x128xf32>
    %c0_18 = arith.constant 0 : index
    %c0_19 = arith.constant 0 : index
    %21 = vector.load %arg8[%c0_18, %c0_19] : memref<64x8xf32, #tpu.memory_space<vmem>>, vector<64x8xf32>
    %22 = arith.truncf %21 : vector<64x8xf32> to vector<64x8xbf16>
    %c0_20 = arith.constant 0 : index
    %c0_21 = arith.constant 0 : index
    %23 = vector.load %arg10[%c0_20, %c0_21] : memref<8x128xbf16, #tpu.memory_space<vmem>>, vector<8x128xbf16>
    %cst_22 = arith.constant dense<0.000000e+00> : vector<64x128xf32>
    %24 = tpu.matmul %22, %23, %cst_22 {dimension_numbers = #tpu.dot_dimension_numbers<[1], [0], [0], [1], [0, 0, 1, 1], [], []>} : vector<64x8xbf16>, vector<8x128xbf16>, vector<64x128xf32> -> vector<64x128xf32>
    %25 = arith.mulf %15, %15 : vector<64x128xf32>
    %26 = arith.mulf %15, %24 : vector<64x128xf32>
    %27 = arith.mulf %25, %24 : vector<64x128xf32>
    %28 = arith.mulf %15, %20 : vector<64x128xf32>
    %29 = arith.mulf %25, %20 : vector<64x128xf32>
    %30 = tpu.concatenate %26, %27, %28, %29 in 1 : vector<64x128xf32>, vector<64x128xf32>, vector<64x128xf32>, vector<64x128xf32> -> vector<64x512xf32>
    %cst_23 = arith.constant 1.000000e+00 : f32
    %31 = vector.broadcast %cst_23 : f32 to vector<8x64xf32>
    %c0_24 = arith.constant 0 : index
    %c0_25 = arith.constant 0 : index
    %c0_26 = arith.constant 0 : index
    %32 = vector.load %arg12[%c0_24, %c0_25, %c0_26] : memref<1x8x512xf32, #tpu.memory_space<vmem>>, vector<1x8x512xf32>
    %33 = vector.shape_cast %32 : vector<1x8x512xf32> to vector<8x512xf32>
    %cst_27 = arith.constant dense<0.000000e+00> : vector<8x512xf32>
    %34 = tpu.matmul %31, %30, %cst_27 {dimension_numbers = #tpu.dot_dimension_numbers<[1], [0], [0], [1], [0, 0, 1, 1], [], []>} : vector<8x64xf32>, vector<64x512xf32>, vector<8x512xf32> -> vector<8x512xf32>
    %35 = arith.addf %33, %34 : vector<8x512xf32>
    %c0_28 = arith.constant 0 : index
    %c0_29 = arith.constant 0 : index
    %c0_30 = arith.constant 0 : index
    %36 = vector.load %arg12[%c0_28, %c0_29, %c0_30] : memref<1x8x512xf32, #tpu.memory_space<vmem>>, vector<1x8x512xf32>
    %37 = vector.shape_cast %36 : vector<1x8x512xf32> to vector<8x512xf32>
    %38 = vector.shape_cast %35 : vector<8x512xf32> to vector<1x8x512xf32>
    tpu.vector_store %arg12[%c0_28, %c0_29, %c0_30], %38 {strides = array<i32>} : memref<1x8x512xf32, #tpu.memory_space<vmem>>, vector<1x8x512xf32>,
    return
  }
  func.func @transform_0(%arg0: i32, %arg1: i32) -> (i32, i32) {
    %c2_i32 = arith.constant 2 : i32
    %0 = arith.muli %arg0, %c2_i32 : i32
    %1 = arith.addi %0, %arg1 : i32
    %c0_i32 = arith.constant 0 : i32
    %c0_i32_0 = arith.constant 0 : i32
    return %1, %c0_i32 : i32, i32
  }
  func.func @transform_1(%arg0: i32, %arg1: i32) -> (i32, i32) {
    %c0_i32 = arith.constant 0 : i32
    %c0_i32_0 = arith.constant 0 : i32
    %c0_i32_1 = arith.constant 0 : i32
    return %c0_i32, %c0_i32_0 : i32, i32
  }
  func.func @transform_2(%arg0: i32, %arg1: i32) -> (i32, i32) {
    %c0_i32 = arith.constant 0 : i32
    %c0_i32_0 = arith.constant 0 : i32
    %c0_i32_1 = arith.constant 0 : i32
    return %c0_i32, %c0_i32_0 : i32, i32
  }
  func.func @transform_3(%arg0: i32, %arg1: i32) -> (i32, i32) {
    %c0_i32 = arith.constant 0 : i32
    %c0_i32_0 = arith.constant 0 : i32
    %c0_i32_1 = arith.constant 0 : i32
    return %c0_i32, %c0_i32_0 : i32, i32
  }
  func.func @transform_4(%arg0: i32, %arg1: i32) -> (i32, i32) {
    %c0_i32 = arith.constant 0 : i32
    %c0_i32_0 = arith.constant 0 : i32
    %c0_i32_1 = arith.constant 0 : i32
    return %c0_i32, %c0_i32_0 : i32, i32
  }
  func.func @transform_5(%arg0: i32, %arg1: i32) -> (i32, i32) {
    %c2_i32 = arith.constant 2 : i32
    %0 = arith.muli %arg0, %c2_i32 : i32
    %1 = arith.addi %0, %arg1 : i32
    %c0_i32 = arith.constant 0 : i32
    %c0_i32_0 = arith.constant 0 : i32
    return %1, %c0_i32 : i32, i32
  }
  func.func @transform_6(%arg0: i32, %arg1: i32) -> (i32, i32) {
    %c2_i32 = arith.constant 2 : i32
    %0 = arith.muli %arg0, %c2_i32 : i32
    %1 = arith.addi %0, %arg1 : i32
    %c0_i32 = arith.constant 0 : i32
    %c0_i32_0 = arith.constant 0 : i32
    return %1, %c0_i32 : i32, i32
  }
  func.func @transform_7(%arg0: i32, %arg1: i32) -> (i32, i32) {
    %c0_i32 = arith.constant 0 : i32
    %c0_i32_0 = arith.constant 0 : i32
    %c0_i32_1 = arith.constant 0 : i32
    return %c0_i32, %c0_i32_0 : i32, i32
  }
  func.func @transform_8(%arg0: i32, %arg1: i32) -> (i32, i32) {
    %c0_i32 = arith.constant 0 : i32
    %c0_i32_0 = arith.constant 0 : i32
    %c0_i32_1 = arith.constant 0 : i32
    return %c0_i32, %c0_i32_0 : i32, i32
  }
  func.func @transform_9(%arg0: i32, %arg1: i32) -> (i32, i32) {
    %c2_i32 = arith.constant 2 : i32
    %0 = arith.muli %arg0, %c2_i32 : i32
    %1 = arith.addi %0, %arg1 : i32
    %c0_i32 = arith.constant 0 : i32
    %c0_i32_0 = arith.constant 0 : i32
    return %1, %c0_i32 : i32, i32
  }
  func.func @transform_10(%arg0: i32, %arg1: i32) -> (i32, i32, i32) {
    %c0_i32 = arith.constant 0 : i32
    %c0_i32_0 = arith.constant 0 : i32
    %c0_i32_1 = arith.constant 0 : i32
    return %arg0, %c0_i32, %c0_i32_0 : i32, i32, i32
  }
}

</mosaic_0001>

<llo_original>
// kernel: codir_forward_train.1
$region0: #{codir_forward_train.1}
  #allocation0 [shape = 'u32[]', space=smem, size = 0x4, offset = 0x4, fixed_abs, tag = 'smem constant byte address 0x4 - core index']
  #allocation1 [shape = 'u32[144,128]{1,0:T(1,128)}', space=vmem, size = 0x12000, scoped, tag = 'internal scratch']
  %s0 = inlined_call_operand.vmem [shape: f32[256,32], index: 0, kind: input, shape index: {}]
  %s1 = inlined_call_operand.vmem [shape: bf16[32,64], index: 1, kind: input, shape index: {}]
  %s2 = inlined_call_operand.vmem [shape: f32[1,64], index: 2, kind: input, shape index: {}]
  %s3 = inlined_call_operand.vmem [shape: bf16[64,128], index: 3, kind: input, shape index: {}]
  %s4 = inlined_call_operand.vmem [shape: f32[1,128], index: 4, kind: input, shape index: {}]
  %s5 = inlined_call_operand.vmem [shape: f32[256,4], index: 5, kind: input, shape index: {}]
  %s6 = inlined_call_operand.vmem [shape: f32[256,8], index: 6, kind: input, shape index: {}]
  %s7 = inlined_call_operand.vmem [shape: bf16[4,128], index: 7, kind: input, shape index: {}]
  %s8 = inlined_call_operand.vmem [shape: bf16[8,128], index: 8, kind: input, shape index: {}]
  %s9 = inlined_call_operand.hbm [shape: f32[256,128], index: 9, kind: output, shape index: {0}]
  %s10 = inlined_call_operand.vmem [shape: f32[2,8,512], index: 10, kind: output, shape index: {1}]
  %11 = xla_tuple %s9, %s10
  %s12 = sld [smem:[#allocation0]]
  $region81: #{codir_forward_train.1} parent=0
    _
  %s14 = ssub.s32 1, %s12
  %s15 = scalar_select 0, %s14, %s12
  $region1: #{codir_forward_train.1} parent=0
    #allocation2 [shape = 'u8[65536]{0}', space=vmem, size = 0x10000, scoped, tag = 'output window, operand 0']
    #allocation3 [shape = 's32[2]{0}', space=sflag, size = 0x8, scoped, tag = 'scoped memory for codir_forward_train.1']
    %16 = vsyncpa [#allocation3], 0
    %s17 = scalar_lea.sflag [#allocation3], 1
    %18 = vsyncpa %s17, 0
    loop: start=0, step=1, limit=6
    $region2: #{codir_forward_train.1} parent=1 // loop_pre_header
      _
    $region3: #{codir_forward_train.1} parent=1 // loop_header
      %s20 = sphi 0, %s24
      %p21 = scmp.ge.s32.totalorder %s20, 6
      %s27 = sphi 0, %s39
      %s28 = sphi 0, %s35
      %s29 = sphi 0, %s27
      %s30 = sphi 0, %s28
      %s31 = sphi 0, %s29
      %s32 = sphi 0, %s30
      %s46 = sphi 0, %s48
      %s49 = sphi 0, %s46
      %s50 = sphi 0, %s49
      %s66 = sphi 0, %s50
      %s70 = sphi 0, %s70
      %s72 = sphi 0, %s70
      %s73 = sphi 0, %s72
      %s87 = sphi 0, %s73
      %s91 = sphi 0, %s91
      %s93 = sphi 0, %s91
      %s94 = sphi 0, %s93
      %s108 = sphi 0, %s94
      %s112 = sphi 0, %s112
      %s114 = sphi 0, %s112
      %s115 = sphi 0, %s114
      %s129 = sphi 0, %s115
      %s133 = sphi 0, %s133
      %s135 = sphi 0, %s133
      %s136 = sphi 0, %s135
      %s150 = sphi 0, %s136
      %s160 = sphi 0, %s162
      %s163 = sphi 0, %s160
      %s164 = sphi 0, %s163
      %s180 = sphi 0, %s164
      %s190 = sphi 0, %s192
      %s193 = sphi 0, %s190
      %s194 = sphi 0, %s193
      %s210 = sphi 0, %s194
      %s214 = sphi 0, %s214
      %s216 = sphi 0, %s214
      %s217 = sphi 0, %s216
      %s231 = sphi 0, %s217
      %s235 = sphi 0, %s235
      %s237 = sphi 0, %s235
      %s238 = sphi 0, %s237
      %s252 = sphi 0, %s238
      %s262 = sphi 0, %s264
      %s265 = sphi 0, %s262
      %s266 = sphi 0, %s265
      %s282 = sphi 0, %s266
      %s288 = sphi 0, %s290
      %s291 = sphi 0, %s288
      %s292 = sphi 0, %s291
      %s308 = sphi 0, %s292
    $region4: #{codir_forward_train.1} parent=1 // loop_header_branch
      %23 = sbr.rel (%p21) target = $region8
    $region5: #{codir_forward_train.1} parent=1 // loop_body
      %s25 = ssub.s32 %s20, 1
      %s26 = ssub.s32 %s20, 2
      %s33 = sadd.s32 1, %s28
      %p34 = scmp.ge.s32.totalorder %s33, 2
      %s35 = scalar_select %p34, 0, %s33
      %s36 = sadd.s32 1, %s27
      %s37 = scalar_select %p34, %s36, %s27
      %p38 = scmp.ge.s32.totalorder %s37, 2
      %s39 = scalar_select %p38, 0, %s37
      %s40 = smul.u32 %s27, 2
      %s41 = sadd.s32 %s40, %s28
      %s42 = smul.u32 %s39, 2
      %s43 = sadd.s32 %s42, %s35
      %s44 = ssub.s32 %s41, %s43
      %p45 = scmp.eq.s32.totalorder %s44, 0
      %s47 = sadd.s32 %s46, 1
      %s48 = scalar_select %p45, %s46, %s47
      %p51 = pneg %p45
      %p52 = scmp.eq.s32.totalorder %s20, 3
      %p53 = por %p51, %p52
      %p54 = scmp.ne.s32.totalorder %s46, %s49
      %p55 = scmp.eq.s32.totalorder %s20, 0
      %p56 = por %p54, %p55
      %p57 = scmp.ne.s32.totalorder %s46, %s49
      %p58 = scmp.eq.s32.totalorder %s25, 3
      %p59 = por %p57, %p58
      %p60 = scmp.ne.s32.totalorder %s49, %s50
      %p61 = scmp.eq.s32.totalorder %s25, 0
      %p62 = por %p60, %p61
      %p63 = scmp.ne.s32.totalorder %s49, %s50
      %p64 = scmp.eq.s32.totalorder %s26, 3
      %p65 = por %p63, %p64
      %p67 = scmp.ne.s32.totalorder %s50, %s66
      %p68 = scmp.eq.s32.totalorder %s26, 0
      %p69 = por %p67, %p68
      %s71 = sadd.s32 %s70, 1
      %p74 = scmp.eq.s32.totalorder %s20, 3
      %p75 = scmp.ne.s32.totalorder %s70, %s72
      %p76 = scmp.eq.s32.totalorder %s20, 0
      %p77 = por %p75, %p76
      %p78 = scmp.ne.s32.totalorder %s70, %s72
      %p79 = scmp.eq.s32.totalorder %s25, 3
      %p80 = por %p78, %p79
      %p81 = scmp.ne.s32.totalorder %s72, %s73
      %p82 = scmp.eq.s32.totalorder %s25, 0
      %p83 = por %p81, %p82
      %p84 = scmp.ne.s32.totalorder %s72, %s73
      %p85 = scmp.eq.s32.totalorder %s26, 3
      %p86 = por %p84, %p85
      %p88 = scmp.ne.s32.totalorder %s73, %s87
      %p89 = scmp.eq.s32.totalorder %s26, 0
      %p90 = por %p88, %p89
      %s92 = sadd.s32 %s91, 1
      %p95 = scmp.eq.s32.totalorder %s20, 3
      %p96 = scmp.ne.s32.totalorder %s91, %s93
      %p97 = scmp.eq.s32.totalorder %s20, 0
      %p98 = por %p96, %p97
      %p99 = scmp.ne.s32.totalorder %s91, %s93
      %p100 = scmp.eq.s32.totalorder %s25, 3
      %p101 = por %p99, %p100
      %p102 = scmp.ne.s32.totalorder %s93, %s94
      %p103 = scmp.eq.s32.totalorder %s25, 0
      %p104 = por %p102, %p103
      %p105 = scmp.ne.s32.totalorder %s93, %s94
      %p106 = scmp.eq.s32.totalorder %s26, 3
      %p107 = por %p105, %p106
      %p109 = scmp.ne.s32.totalorder %s94, %s108
      %p110 = scmp.eq.s32.totalorder %s26, 0
      %p111 = por %p109, %p110
      %s113 = sadd.s32 %s112, 1
      %p116 = scmp.eq.s32.totalorder %s20, 3
      %p117 = scmp.ne.s32.totalorder %s112, %s114
      %p118 = scmp.eq.s32.totalorder %s20, 0
      %p119 = por %p117, %p118
      %p120 = scmp.ne.s32.totalorder %s112, %s114
      %p121 = scmp.eq.s32.totalorder %s25, 3
      %p122 = por %p120, %p121
      %p123 = scmp.ne.s32.totalorder %s114, %s115
      %p124 = scmp.eq.s32.totalorder %s25, 0
      %p125 = por %p123, %p124
      %p126 = scmp.ne.s32.totalorder %s114, %s115
      %p127 = scmp.eq.s32.totalorder %s26, 3
      %p128 = por %p126, %p127
      %p130 = scmp.ne.s32.totalorder %s115, %s129
      %p131 = scmp.eq.s32.totalorder %s26, 0
      %p132 = por %p130, %p131
      %s134 = sadd.s32 %s133, 1
      %p137 = scmp.eq.s32.totalorder %s20, 3
      %p138 = scmp.ne.s32.totalorder %s133, %s135
      %p139 = scmp.eq.s32.totalorder %s20, 0
      %p140 = por %p138, %p139
      %p141 = scmp.ne.s32.totalorder %s133, %s135
      %p142 = scmp.eq.s32.totalorder %s25, 3
      %p143 = por %p141, %p142
      %p144 = scmp.ne.s32.totalorder %s135, %s136
      %p145 = scmp.eq.s32.totalorder %s25, 0
      %p146 = por %p144, %p145
      %p147 = scmp.ne.s32.totalorder %s135, %s136
      %p148 = scmp.eq.s32.totalorder %s26, 3
      %p149 = por %p147, %p148
      %p151 = scmp.ne.s32.totalorder %s136, %s150
      %p152 = scmp.eq.s32.totalorder %s26, 0
      %p153 = por %p151, %p152
      %s154 = smul.u32 %s27, 2
      %s155 = sadd.s32 %s154, %s28
      %s156 = smul.u32 %s39, 2
      %s157 = sadd.s32 %s156, %s35
      %s158 = ssub.s32 %s155, %s157
      %p159 = scmp.eq.s32.totalorder %s158, 0
      %s161 = sadd.s32 %s160, 1
      %s162 = scalar_select %p159, %s160, %s161
      %p165 = pneg %p159
      %p166 = scmp.eq.s32.totalorder %s20, 3
      %p167 = por %p165, %p166
      %p168 = scmp.ne.s32.totalorder %s160, %s163
      %p169 = scmp.eq.s32.totalorder %s20, 0
      %p170 = por %p168, %p169
      %p171 = scmp.ne.s32.totalorder %s160, %s163
      %p172 = scmp.eq.s32.totalorder %s25, 3
      %p173 = por %p171, %p172
      %p174 = scmp.ne.s32.totalorder %s163, %s164
      %p175 = scmp.eq.s32.totalorder %s25, 0
      %p176 = por %p174, %p175
      %p177 = scmp.ne.s32.totalorder %s163, %s164
      %p178 = scmp.eq.s32.totalorder %s26, 3
      %p179 = por %p177, %p178
      %p181 = scmp.ne.s32.totalorder %s164, %s180
      %p182 = scmp.eq.s32.totalorder %s26, 0
      %p183 = por %p181, %p182
      %s184 = smul.u32 %s27, 2
      %s185 = sadd.s32 %s184, %s28
      %s186 = smul.u32 %s39, 2
      %s187 = sadd.s32 %s186, %s35
      %s188 = ssub.s32 %s185, %s187
      %p189 = scmp.eq.s32.totalorder %s188, 0
      %s191 = sadd.s32 %s190, 1
      %s192 = scalar_select %p189, %s190, %s191
      %p195 = pneg %p189
      %p196 = scmp.eq.s32.totalorder %s20, 3
      %p197 = por %p195, %p196
      %p198 = scmp.ne.s32.totalorder %s190, %s193
      %p199 = scmp.eq.s32.totalorder %s20, 0
      %p200 = por %p198, %p199
      %p201 = scmp.ne.s32.totalorder %s190, %s193
      %p202 = scmp.eq.s32.totalorder %s25, 3
      %p203 = por %p201, %p202
      %p204 = scmp.ne.s32.totalorder %s193, %s194
      %p205 = scmp.eq.s32.totalorder %s25, 0
      %p206 = por %p204, %p205
      %p207 = scmp.ne.s32.totalorder %s193, %s194
      %p208 = scmp.eq.s32.totalorder %s26, 3
      %p209 = por %p207, %p208
      %p211 = scmp.ne.s32.totalorder %s194, %s210
      %p212 = scmp.eq.s32.totalorder %s26, 0
      %p213 = por %p211, %p212
      %s215 = sadd.s32 %s214, 1
      %p218 = scmp.eq.s32.totalorder %s20, 3
      %p219 = scmp.ne.s32.totalorder %s214, %s216
      %p220 = scmp.eq.s32.totalorder %s20, 0
      %p221 = por %p219, %p220
      %p222 = scmp.ne.s32.totalorder %s214, %s216
      %p223 = scmp.eq.s32.totalorder %s25, 3
      %p224 = por %p222, %p223
      %p225 = scmp.ne.s32.totalorder %s216, %s217
      %p226 = scmp.eq.s32.totalorder %s25, 0
      %p227 = por %p225, %p226
      %p228 = scmp.ne.s32.totalorder %s216, %s217
      %p229 = scmp.eq.s32.totalorder %s26, 3
      %p230 = por %p228, %p229
      %p232 = scmp.ne.s32.totalorder %s217, %s231
      %p233 = scmp.eq.s32.totalorder %s26, 0
      %p234 = por %p232, %p233
      %s236 = sadd.s32 %s235, 1
      %p239 = scmp.eq.s32.totalorder %s20, 3
      %p240 = scmp.ne.s32.totalorder %s235, %s237
      %p241 = scmp.eq.s32.totalorder %s20, 0
      %p242 = por %p240, %p241
      %p243 = scmp.ne.s32.totalorder %s235, %s237
      %p244 = scmp.eq.s32.totalorder %s25, 3
      %p245 = por %p243, %p244
      %p246 = scmp.ne.s32.totalorder %s237, %s238
      %p247 = scmp.eq.s32.totalorder %s25, 0
      %p248 = por %p246, %p247
      %p249 = scmp.ne.s32.totalorder %s237, %s238
      %p250 = scmp.eq.s32.totalorder %s26, 3
      %p251 = por %p249, %p250
      %p253 = scmp.ne.s32.totalorder %s238, %s252
      %p254 = scmp.eq.s32.totalorder %s26, 0
      %p255 = por %p253, %p254
      %s256 = smul.u32 %s27, 2
      %s257 = sadd.s32 %s256, %s28
      %s258 = smul.u32 %s39, 2
      %s259 = sadd.s32 %s258, %s35
      %s260 = ssub.s32 %s257, %s259
      %p261 = scmp.eq.s32.totalorder %s260, 0
      %s263 = sadd.s32 %s262, 1
      %s264 = scalar_select %p261, %s262, %s263
      %p267 = pneg %p261
      %p268 = scmp.eq.s32.totalorder %s20, 3
      %p269 = por %p267, %p268
      %p270 = scmp.ne.s32.totalorder %s262, %s265
      %p271 = scmp.eq.s32.totalorder %s20, 0
      %p272 = por %p270, %p271
      %p273 = scmp.ne.s32.totalorder %s262, %s265
      %p274 = scmp.eq.s32.totalorder %s25, 3
      %p275 = por %p273, %p274
      %p276 = scmp.ne.s32.totalorder %s265, %s266
      %p277 = scmp.eq.s32.totalorder %s25, 0
      %p278 = por %p276, %p277
      %p279 = scmp.ne.s32.totalorder %s265, %s266
      %p280 = scmp.eq.s32.totalorder %s26, 3
      %p281 = por %p279, %p280
      %p283 = scmp.ne.s32.totalorder %s266, %s282
      %p284 = scmp.eq.s32.totalorder %s26, 0
      %p285 = por %p283, %p284
      %s286 = ssub.s32 %s27, %s39
      %p287 = scmp.eq.s32.totalorder %s286, 0
      %s289 = sadd.s32 %s288, 1
      %s290 = scalar_select %p287, %s288, %s289
      %p293 = pneg %p287
      %p294 = scmp.eq.s32.totalorder %s20, 3
      %p295 = por %p293, %p294
      %p296 = scmp.ne.s32.totalorder %s288, %s291
      %p297 = scmp.eq.s32.totalorder %s20, 0
      %p298 = por %p296, %p297
      %p299 = scmp.ne.s32.totalorder %s288, %s291
      %p300 = scmp.eq.s32.totalorder %s25, 3
      %p301 = por %p299, %p300
      %p302 = scmp.ne.s32.totalorder %s291, %s292
      %p303 = scmp.eq.s32.totalorder %s25, 0
      %p304 = por %p302, %p303
      %p305 = scmp.ne.s32.totalorder %s291, %s292
      %p306 = scmp.eq.s32.totalorder %s26, 3
      %p307 = por %p305, %p306
      %p309 = scmp.ne.s32.totalorder %s292, %s308
      %p310 = scmp.eq.s32.totalorder %s26, 0
      %p311 = por %p309, %p310
      %p312 = scmp.le.s32.totalorder 1, %s20
      %p313 = scmp.lt.s32.totalorder %s20, 5
      %p314 = pnand %p312, %p313
      %p315 = pneg %p314
      // Predicated region
      $region9: #{codir_forward_train.1} parent=5 // pred_check
        _
      $region10: #{codir_forward_train.1} parent=5 // pred_check_branch
        %317 = sbr.rel (%p314) target = $region12
      $region11: #{codir_forward_train.1} parent=5 // pred_region
        %s318 = ssub.s32 %s20, 1
        // Predicated region
        $region13: #{codir_forward_train.1} parent=11 // pred_check
          %p319 = pneg %p83
        $region14: #{codir_forward_train.1} parent=11 // pred_check_branch
          %321 = sbr.rel (%p319) target = $region16
        $region15: #{codir_forward_train.1} parent=11 // pred_region
          _
        $region16: #{codir_forward_train.1} parent=11 // pred_fallthru
          _
        // Predicated region
        $region17: #{codir_forward_train.1} parent=11 // pred_check
          %p322 = pneg %p104
        $region18: #{codir_forward_train.1} parent=11 // pred_check_branch
          %324 = sbr.rel (%p322) target = $region20
        $region19: #{codir_forward_train.1} parent=11 // pred_region
          _
        $region20: #{codir_forward_train.1} parent=11 // pred_fallthru
          _
        // Predicated region
        $region21: #{codir_forward_train.1} parent=11 // pred_check
          %p325 = pneg %p125
        $region22: #{codir_forward_train.1} parent=11 // pred_check_branch
          %327 = sbr.rel (%p325) target = $region24
        $region23: #{codir_forward_train.1} parent=11 // pred_region
          _
        $region24: #{codir_forward_train.1} parent=11 // pred_fallthru
          _
        // Predicated region
        $region25: #{codir_forward_train.1} parent=11 // pred_check
          %p328 = pneg %p146
        $region26: #{codir_forward_train.1} parent=11 // pred_check_branch
          %330 = sbr.rel (%p328) target = $region28
        $region27: #{codir_forward_train.1} parent=11 // pred_region
          _
        $region28: #{codir_forward_train.1} parent=11 // pred_fallthru
          _
        // Predicated region
        $region29: #{codir_forward_train.1} parent=11 // pred_check
          %p331 = pneg %p227
        $region30: #{codir_forward_train.1} parent=11 // pred_check_branch
          %333 = sbr.rel (%p331) target = $region32
        $region31: #{codir_forward_train.1} parent=11 // pred_region
          _
        $region32: #{codir_forward_train.1} parent=11 // pred_fallthru
          _
        // Predicated region
        $region33: #{codir_forward_train.1} parent=11 // pred_check
          %p334 = pneg %p248
        $region34: #{codir_forward_train.1} parent=11 // pred_check_branch
          %336 = sbr.rel (%p334) target = $region36
        $region35: #{codir_forward_train.1} parent=11 // pred_region
          _
        $region36: #{codir_forward_train.1} parent=11 // pred_fallthru
          _
      $region12: #{codir_forward_train.1} parent=5 // pred_fallthru
        _
      %p337 = scmp.lt.s32.totalorder %s20, 4
      // Predicated region
      $region37: #{codir_forward_train.1} parent=5 // pred_check
        %p338 = pneg %p337
      $region38: #{codir_forward_train.1} parent=5 // pred_check_branch
        %340 = sbr.rel (%p338) target = $region40
      $region39: #{codir_forward_train.1} parent=5 // pred_region
        // Predicated region
        $region41: #{codir_forward_train.1} parent=39 // pred_check
          %p341 = pneg %p56
        $region42: #{codir_forward_train.1} parent=39 // pred_check_branch
          %343 = sbr.rel (%p341) target = $region44
        $region43: #{codir_forward_train.1} parent=39 // pred_region
          %s344 = smul.u32 %s27, 2
          %s345 = sadd.s32 %s344, %s28
          %s346 = smul.u32 8, %s345
          %p347 = scmp.lt.s32.totalorder %s346, 31
          %s348 = scalar_select %p347, %s346, 31
          %s349 = smul.addr %s348, 8
          %s350 = scalar_lea.vmem %s0, %s349
          %s351 = smul.u32 %s27, 2
          %s352 = sadd.s32 %s351, %s28
          %s353 = smul.u32 8, %s352
        $region44: #{codir_forward_train.1} parent=39 // pred_fallthru
          _
        // Predicated region
        $region45: #{codir_forward_train.1} parent=39 // pred_check
          %p354 = pneg %p170
        $region46: #{codir_forward_train.1} parent=39 // pred_check_branch
          %356 = sbr.rel (%p354) target = $region48
        $region47: #{codir_forward_train.1} parent=39 // pred_region
          %s357 = smul.u32 %s27, 2
          %s358 = sadd.s32 %s357, %s28
          %s359 = smul.u32 8, %s358
          %p360 = scmp.lt.s32.totalorder %s359, 31
          %s361 = scalar_select %p360, %s359, 31
          %s362 = smul.addr %s361, 8
          %s363 = scalar_lea.vmem %s5, %s362
          %s364 = smul.u32 %s27, 2
          %s365 = sadd.s32 %s364, %s28
          %s366 = smul.u32 8, %s365
        $region48: #{codir_forward_train.1} parent=39 // pred_fallthru
          _
        // Predicated region
        $region49: #{codir_forward_train.1} parent=39 // pred_check
          %p367 = pneg %p200
        $region50: #{codir_forward_train.1} parent=39 // pred_check_branch
          %369 = sbr.rel (%p367) target = $region52
        $region51: #{codir_forward_train.1} parent=39 // pred_region
          %s370 = smul.u32 %s27, 2
          %s371 = sadd.s32 %s370, %s28
          %s372 = smul.u32 8, %s371
          %p373 = scmp.lt.s32.totalorder %s372, 31
          %s374 = scalar_select %p373, %s372, 31
          %s375 = smul.addr %s374, 8
          %s376 = scalar_lea.vmem %s6, %s375
          %s377 = smul.u32 %s27, 2
          %s378 = sadd.s32 %s377, %s28
          %s379 = smul.u32 8, %s378
        $region52: #{codir_forward_train.1} parent=39 // pred_fallthru
          _
      $region40: #{codir_forward_train.1} parent=5 // pred_fallthru
        _
      %p380 = scmp.le.s32.totalorder 1, %s20
      %p381 = scmp.lt.s32.totalorder %s20, 5
      %p382 = pnand %p380, %p381
      %p383 = pneg %p382
      // Predicated region
      $region53: #{codir_forward_train.1} parent=5 // pred_check
        _
      $region54: #{codir_forward_train.1} parent=5 // pred_check_branch
        %385 = sbr.rel (%p382) target = $region56
      $region55: #{codir_forward_train.1} parent=5 // pred_region
        %s386 = ssub.s32 %s20, 1
        %s387 = smul.u32 %s29, 2
        %s388 = sadd.s32 %s387, %s30
        %s389 = smul.u32 8, %s388
        %p390 = scmp.lt.s32.totalorder %s389, 31
        %s391 = scalar_select %p390, %s389, 31
        %s392 = smul.addr %s391, 8
        %s393 = scalar_lea.vmem %s0, %s392
        %p394 = pneg %p62
        %p395 = pneg %p59
        %p396 = pneg %p83
        %p397 = pneg %p80
        %p398 = pneg %p104
        %p399 = pneg %p101
        %p400 = pneg %p125
        %p401 = pneg %p122
        %p402 = pneg %p146
        %p403 = pneg %p143
        %s404 = smul.u32 %s29, 2
        %s405 = sadd.s32 %s404, %s30
        %s406 = smul.u32 8, %s405
        %p407 = scmp.lt.s32.totalorder %s406, 31
        %s408 = scalar_select %p407, %s406, 31
        %s409 = smul.addr %s408, 8
        %s410 = scalar_lea.vmem %s5, %s409
        %p411 = pneg %p176
        %p412 = pneg %p173
        %s413 = smul.u32 %s29, 2
        %s414 = sadd.s32 %s413, %s30
        %s415 = smul.u32 8, %s414
        %p416 = scmp.lt.s32.totalorder %s415, 31
        %s417 = scalar_select %p416, %s415, 31
        %s418 = smul.addr %s417, 8
        %s419 = scalar_lea.vmem %s6, %s418
        %p420 = pneg %p206
        %p421 = pneg %p203
        %p422 = pneg %p227
        %p423 = pneg %p224
        %p424 = pneg %p248
        %p425 = pneg %p245
        %p426 = pneg %p278
        %p427 = pneg %p275
        %s428 = sand.u32 %s265, 1
        %s429 = scalar_lea.sflag [#allocation3], %s428
        %s430 = sand.u32 %s265, 1
        %s431 = smul.addr %s430, 64
        %s432 = scalar_lea.vmem [#allocation2], %s431
        %p433 = pneg %p304
        %p434 = pneg %p301
        %p435 = scmp.lt.s32.totalorder %s29, 1
        %s436 = scalar_select %p435, %s29, 1
        %s437 = smul.addr %s436, 4
        %s438 = smul.addr %s437, 8
        %s439 = scalar_lea.vmem %s10, %s438
        %s440 = smul.u32 %s29, 2
        %s441 = sadd.s32 %s440, %s30
        %s442 = smul.u32 8, %s441
        %p443 = scmp.lt.s32.totalorder %s442, 31
        %s444 = scalar_select %p443, %s442, 31
        %s445 = smul.addr %s444, 8
        %s446 = scalar_lea.vmem %s0, %s445
        %s447 = smul.u32 %s29, 2
        %s448 = sadd.s32 %s447, %s30
        %s449 = smul.u32 8, %s448
        %s450 = smul.u32 %s29, 2
        %s451 = sadd.s32 %s450, %s30
        %s452 = smul.u32 8, %s451
        %p453 = scmp.lt.s32.totalorder %s452, 31
        %s454 = scalar_select %p453, %s452, 31
        %s455 = smul.addr %s454, 8
        %s456 = scalar_lea.vmem %s5, %s455
        %s457 = smul.u32 %s29, 2
        %s458 = sadd.s32 %s457, %s30
        %s459 = smul.u32 8, %s458
        %s460 = smul.u32 %s29, 2
        %s461 = sadd.s32 %s460, %s30
        %s462 = smul.u32 8, %s461
        %p463 = scmp.lt.s32.totalorder %s462, 31
        %s464 = scalar_select %p463, %s462, 31
        %s465 = smul.addr %s464, 8
        %s466 = scalar_lea.vmem %s6, %s465
        %s467 = smul.u32 %s29, 2
        %s468 = sadd.s32 %s467, %s30
        %s469 = smul.u32 8, %s468
        %s470 = smul.u32 %s29, 2
        %s471 = sadd.s32 %s470, %s30
        %s472 = smul.u32 8, %s471
        %p473 = scmp.lt.s32.totalorder %s29, 1
        %s474 = scalar_select %p473, %s29, 1
        %s475 = smul.addr %s474, 4
        %s476 = smul.addr %s475, 8
        %s477 = scalar_lea.vmem %s10, %s476
        %p479 = scmp.eq.s32.totalorder %s30, 0
        // Predicated region
        $region57: #{codir_forward_train.1} parent=55 // pred_check
          %p480 = pneg %p479
        $region58: #{codir_forward_train.1} parent=55 // pred_check_branch
          %482 = sbr.rel (%p480) target = $region60
        $region59: #{codir_forward_train.1} parent=55 // pred_region
          %483 = vst [vmem:[%s477] sm:$0xff] 0.0
          %484 = vst [vmem:[%s477 + $0x8] sm:$0xff] 0.0
          %485 = vst [vmem:[%s477 + $0x10] sm:$0xff] 0.0
          %486 = vst [vmem:[%s477 + $0x18] sm:$0xff] 0.0
        $region60: #{codir_forward_train.1} parent=55 // pred_fallthru
          _
        %v487 = vld [vmem:[%s446] sm:$0xff]
        %v488 = vld [vmem:[%s446 + $0x8] sm:$0xff]
        %v489 = vld [vmem:[%s446 + $0x10] sm:$0xff]
        %v490 = vld [vmem:[%s446 + $0x18] sm:$0xff]
        %v491 = vld [vmem:[%s446 + $0x20] sm:$0xff]
        %v492 = vld [vmem:[%s446 + $0x28] sm:$0xff]
        %v493 = vld [vmem:[%s446 + $0x30] sm:$0xff]
        %v494 = vld [vmem:[%s446 + $0x38] sm:$0xff]
        %v495 = vpack.c.bf16 %v488, %v487
        %v496 = vpack.c.bf16 %v490, %v489
        %v497 = vpack.c.bf16 %v492, %v491
        %v498 = vpack.c.bf16 %v494, %v493
        %v499 = vld [vmem:[%s1] sm:$0xf]
        %v500 = vld [vmem:[%s1 + $0x4] sm:$0xf]
        %v501 = vld [vmem:[%s1 + $0x8] sm:$0xf]
        %v502 = vld [vmem:[%s1 + $0xc] sm:$0xf]
        %v503 = vld [vmem:[%s2] sm:$0x1]
        %v505 = vlaneseq
        %v506 = vshrl.u32 %v505, 7
        %v507 = vsub.s32 0, %v506
        %v508 = vrot.slane %v503, %v507
        %v514 = vunpack.c.l.b16 %v499
        %v515 = vunpack.c.l.b16 %v500
        %v516 = vunpack.c.l.b16 %v501
        %v517 = vunpack.c.l.b16 %v502
        %v518 = vpack.c.b16 %v515, %v514
        %v519 = vpack.c.b16 %v517, %v516
        %vm522 = vcmask 261120
        %v524 = vsel %vm522, %v495, 0
        %v527 = vsel %vm522, %v496, 0
        %v530 = vsel %vm522, %v497, 0
        %v533 = vsel %vm522, %v498, 0
        %535 = vmatprep.subr.bf16.mxu0 0
        %536 = vmatpush1.bf16.msra.mxu0 0
        %537 = vmatprep.subr.bf16.mxu0 0
        %538 = vmatpush1.bf16.msra.mxu0 0
        %539 = vmatprep.subr.bf16.mxu0 0
        %540 = vmatpush1.bf16.msra.mxu0 0
        %541 = vmatprep.subr.bf16.mxu0 0
        %542 = vmatpush1.bf16.msra.mxu0 0
        %543 = vmatprep.subr.bf16.mxu0 0
        %544 = vmatpush1.bf16.msra.mxu0 0
        %545 = vmatprep.subr.bf16.mxu0 0
        %546 = vmatpush1.bf16.msra.mxu0 0
        %547 = vmatprep.subr.bf16.mxu0 0
        %548 = vmatpush1.bf16.msra.mxu0 %v519
        %549 = vmatprep.subr.bf16.mxu0 0
        %550 = vmatpush1.bf16.msra.mxu0 %v518
        %551 = vmatprep.subr.bf16.mxu0 0
        %552 = vmatpush2.bf16.msra.mxu0 0
        %553 = vmatprep.subr.bf16.mxu0 0
        %554 = vmatpush2.bf16.msra.mxu0 0
        %555 = vmatprep.subr.bf16.mxu0 0
        %556 = vmatpush2.bf16.msra.mxu0 0
        %557 = vmatprep.subr.bf16.mxu0 0
        %558 = vmatpush2.bf16.msra.mxu0 0
        %559 = vmatprep.subr.bf16.mxu0 0
        %560 = vmatpush2.bf16.msra.mxu0 0
        %561 = vmatprep.subr.bf16.mxu0 0
        %562 = vmatpush2.bf16.msra.mxu0 0
        %563 = vmatprep.subr.bf16.mxu0 0
        %564 = vmatpush2.bf16.msra.mxu0 0
        %565 = vmatprep.subr.bf16.mxu0 0
        %566 = vmatpush2.bf16.msra.mxu0 0
        %567 = vmatprep.mubr.bf16.mxu0 0
        %568 = vmatmul.mubr.bf16.gmra.mxu0 %v524
        %v569 = vpop.f32.mrf.mxu0
        %v570 = vadd.f32 %v508, %v569
        %v571 = vpop.f32.mrf.mxu0
        %v572 = vpop.f32.mrf.mxu0
        %v573 = vadd.f32 %v508, %v572
        %v574 = vpop.f32.mrf.mxu0
        %575 = vmatprep.mubr.bf16.mxu0 0
        %576 = vmatmul.mubr.bf16.gmra.mxu0 %v527
        %v577 = vpop.f32.mrf.mxu0
        %v578 = vadd.f32 %v508, %v577
        %v579 = vpop.f32.mrf.mxu0
        %v580 = vpop.f32.mrf.mxu0
        %v581 = vadd.f32 %v508, %v580
        %v582 = vpop.f32.mrf.mxu0
        %583 = vmatprep.mubr.bf16.mxu0 0
        %584 = vmatmul.mubr.bf16.gmra.mxu0 %v530
        %v585 = vpop.f32.mrf.mxu0
        %v586 = vadd.f32 %v508, %v585
        %v587 = vpop.f32.mrf.mxu0
        %v588 = vpop.f32.mrf.mxu0
        %v589 = vadd.f32 %v508, %v588
        %v590 = vpop.f32.mrf.mxu0
        %591 = vmatprep.mubr.bf16.mxu0 0
        %592 = vmatmul.mubr.bf16.gmra.mxu0 %v533
        %v593 = vpop.f32.mrf.mxu0
        %v594 = vadd.f32 %v508, %v593
        %v595 = vpop.f32.mrf.mxu0
        %v596 = vpop.f32.mrf.mxu0
        %v597 = vadd.f32 %v508, %v596
        %v598 = vpop.f32.mrf.mxu0
        %599 = vdwg.mxu0
        %v600 = vpack.c.bf16 %v573, %v570
        %v601 = vpack.c.bf16 %v581, %v578
        %v602 = vpack.c.bf16 %v589, %v586
        %v603 = vpack.c.bf16 %v597, %v594
        %v604 = vld [vmem:[%s3] sm:$0xf]
        %v605 = vld [vmem:[%s3 + $0x4] sm:$0xf]
        %v606 = vld [vmem:[%s3 + $0x8] sm:$0xf]
        %v607 = vld [vmem:[%s3 + $0xc] sm:$0xf]
        %v608 = vld [vmem:[%s3 + $0x10] sm:$0xf]
        %v609 = vld [vmem:[%s3 + $0x14] sm:$0xf]
        %v610 = vld [vmem:[%s3 + $0x18] sm:$0xf]
        %v611 = vld [vmem:[%s3 + $0x1c] sm:$0xf]
        %v612 = vld [vmem:[%s4] sm:$0x1]
        %v614 = vlaneseq
        %v615 = vshrl.u32 %v614, 7
        %v616 = vsub.s32 0, %v615
        %v617 = vrot.slane %v612, %v616
        %v627 = vunpack.c.l.b16 %v604
        %v628 = vunpack.c.l.b16 %v605
        %v629 = vunpack.c.l.b16 %v606
        %v630 = vunpack.c.l.b16 %v607
        %v631 = vunpack.c.l.b16 %v608
        %v632 = vunpack.c.l.b16 %v609
        %v633 = vunpack.c.l.b16 %v610
        %v634 = vunpack.c.l.b16 %v611
        %v635 = vpack.c.b16 %v628, %v627
        %v636 = vpack.c.b16 %v630, %v629
        %v637 = vpack.c.b16 %v632, %v631
        %v638 = vpack.c.b16 %v634, %v633
        %vm643 = vcmask 523264
        %v645 = vsel %vm643, %v600, 0
        %v648 = vsel %vm643, %v601, 0
        %v651 = vsel %vm643, %v602, 0
        %v654 = vsel %vm643, %v603, 0
        %656 = vmatprep.subr.bf16.mxu0 0
        %657 = vmatpush1.bf16.msra.mxu0 0
        %658 = vmatprep.subr.bf16.mxu0 0
        %659 = vmatpush1.bf16.msra.mxu0 0
        %660 = vmatprep.subr.bf16.mxu0 0
        %661 = vmatpush1.bf16.msra.mxu0 0
        %662 = vmatprep.subr.bf16.mxu0 0
        %663 = vmatpush1.bf16.msra.mxu0 0
        %664 = vmatprep.subr.bf16.mxu0 0
        %665 = vmatpush1.bf16.msra.mxu0 %v638
        %666 = vmatprep.subr.bf16.mxu0 0
        %667 = vmatpush1.bf16.msra.mxu0 %v637
        %668 = vmatprep.subr.bf16.mxu0 0
        %669 = vmatpush1.bf16.msra.mxu0 %v636
        %670 = vmatprep.subr.bf16.mxu0 0
        %671 = vmatpush1.bf16.msra.mxu0 %v635
        %672 = vmatprep.subr.bf16.mxu0 0
        %673 = vmatpush2.bf16.msra.mxu0 0
        %674 = vmatprep.subr.bf16.mxu0 0
        %675 = vmatpush2.bf16.msra.mxu0 0
        %676 = vmatprep.subr.bf16.mxu0 0
        %677 = vmatpush2.bf16.msra.mxu0 0
        %678 = vmatprep.subr.bf16.mxu0 0
        %679 = vmatpush2.bf16.msra.mxu0 0
        %680 = vmatprep.subr.bf16.mxu0 0
        %681 = vmatpush2.bf16.msra.mxu0 0
        %682 = vmatprep.subr.bf16.mxu0 0
        %683 = vmatpush2.bf16.msra.mxu0 0
        %684 = vmatprep.subr.bf16.mxu0 0
        %685 = vmatpush2.bf16.msra.mxu0 0
        %686 = vmatprep.subr.bf16.mxu0 0
        %687 = vmatpush2.bf16.msra.mxu0 0
        %688 = vmatprep.mubr.bf16.mxu0 0
        %689 = vmatmul.mubr.bf16.gmra.mxu0 %v645
        %v690 = vpop.f32.mrf.mxu0
        %v691 = vadd.f32 %v617, %v690
        %v692 = vpop.f32.mrf.mxu0
        %v693 = vpop.f32.mrf.mxu0
        %v694 = vadd.f32 %v617, %v693
        %v695 = vpop.f32.mrf.mxu0
        %696 = vmatprep.mubr.bf16.mxu0 0
        %697 = vmatmul.mubr.bf16.gmra.mxu0 %v648
        %v698 = vpop.f32.mrf.mxu0
        %v699 = vadd.f32 %v617, %v698
        %v700 = vpop.f32.mrf.mxu0
        %v701 = vpop.f32.mrf.mxu0
        %v702 = vadd.f32 %v617, %v701
        %v703 = vpop.f32.mrf.mxu0
        %704 = vmatprep.mubr.bf16.mxu0 0
        %705 = vmatmul.mubr.bf16.gmra.mxu0 %v651
        %v706 = vpop.f32.mrf.mxu0
        %v707 = vadd.f32 %v617, %v706
        %v708 = vpop.f32.mrf.mxu0
        %v709 = vpop.f32.mrf.mxu0
        %v710 = vadd.f32 %v617, %v709
        %v711 = vpop.f32.mrf.mxu0
        %712 = vmatprep.mubr.bf16.mxu0 0
        %713 = vmatmul.mubr.bf16.gmra.mxu0 %v654
        %v714 = vpop.f32.mrf.mxu0
        %v715 = vadd.f32 %v617, %v714
        %v716 = vpop.f32.mrf.mxu0
        %v717 = vpop.f32.mrf.mxu0
        %v718 = vadd.f32 %v617, %v717
        %v719 = vpop.f32.mrf.mxu0
        %720 = vdwg.mxu0
        %721 = vst [vmem:[%s432] sm:$0xff] %v691
        %722 = vst [vmem:[%s432 + $0x8] sm:$0xff] %v694
        %723 = vst [vmem:[%s432 + $0x10] sm:$0xff] %v699
        %724 = vst [vmem:[%s432 + $0x18] sm:$0xff] %v702
        %725 = vst [vmem:[%s432 + $0x20] sm:$0xff] %v707
        %726 = vst [vmem:[%s432 + $0x28] sm:$0xff] %v710
        %727 = vst [vmem:[%s432 + $0x30] sm:$0xff] %v715
        %728 = vst [vmem:[%s432 + $0x38] sm:$0xff] %v718
        %v729 = vld [vmem:[%s456] sm:$0xff]
        %v730 = vld [vmem:[%s456 + $0x8] sm:$0xff]
        %v731 = vld [vmem:[%s456 + $0x10] sm:$0xff]
        %v732 = vld [vmem:[%s456 + $0x18] sm:$0xff]
        %v733 = vld [vmem:[%s456 + $0x20] sm:$0xff]
        %v734 = vld [vmem:[%s456 + $0x28] sm:$0xff]
        %v735 = vld [vmem:[%s456 + $0x30] sm:$0xff]
        %v736 = vld [vmem:[%s456 + $0x38] sm:$0xff]
        %v737 = vpack.c.bf16 %v730, %v729
        %v738 = vpack.c.bf16 %v732, %v731
        %v739 = vpack.c.bf16 %v734, %v733
        %v740 = vpack.c.bf16 %v736, %v735
        %v741 = vld [vmem:[%s7] sm:$0x3]
        %vm742 = vcmask 31744
        %v744 = vsel %vm742, %v737, 0
        %v747 = vsel %vm742, %v738, 0
        %v750 = vsel %vm742, %v739, 0
        %v753 = vsel %vm742, %v740, 0
        %vm755 = vcmask 1041408
        %v757 = vsel %vm755, %v741, 0
        %759 = vmatprep.subr.bf16.mxu0 0
        %760 = vmatpush1.bf16.msra.mxu0 0
        %761 = vmatprep.subr.bf16.mxu0 0
        %762 = vmatpush1.bf16.msra.mxu0 0
        %763 = vmatprep.subr.bf16.mxu0 0
        %764 = vmatpush1.bf16.msra.mxu0 0
        %765 = vmatprep.subr.bf16.mxu0 0
        %766 = vmatpush1.bf16.msra.mxu0 0
        %767 = vmatprep.subr.bf16.mxu0 0
        %768 = vmatpush1.bf16.msra.mxu0 0
        %769 = vmatprep.subr.bf16.mxu0 0
        %770 = vmatpush1.bf16.msra.mxu0 0
        %771 = vmatprep.subr.bf16.mxu0 0
        %772 = vmatpush1.bf16.msra.mxu0 0
        %773 = vmatprep.subr.bf16.mxu0 0
        %774 = vmatpush1.bf16.msra.mxu0 %v757
        %775 = vmatprep.subr.bf16.mxu0 0
        %776 = vmatpush2.bf16.msra.mxu0 0
        %777 = vmatprep.subr.bf16.mxu0 0
        %778 = vmatpush2.bf16.msra.mxu0 0
        %779 = vmatprep.subr.bf16.mxu0 0
        %780 = vmatpush2.bf16.msra.mxu0 0
        %781 = vmatprep.subr.bf16.mxu0 0
        %782 = vmatpush2.bf16.msra.mxu0 0
        %783 = vmatprep.subr.bf16.mxu0 0
        %784 = vmatpush2.bf16.msra.mxu0 0
        %785 = vmatprep.subr.bf16.mxu0 0
        %786 = vmatpush2.bf16.msra.mxu0 0
        %787 = vmatprep.subr.bf16.mxu0 0
        %788 = vmatpush2.bf16.msra.mxu0 0
        %789 = vmatprep.subr.bf16.mxu0 0
        %790 = vmatpush2.bf16.msra.mxu0 0
        %791 = vmatprep.mubr.bf16.mxu0 0
        %792 = vmatmul.mubr.bf16.gmra.mxu0 %v744
        %v793 = vpop.f32.mrf.mxu0
        %v794 = vadd.f32 0.0, %v793
        %v795 = vpop.f32.mrf.mxu0
        %v796 = vpop.f32.mrf.mxu0
        %v797 = vadd.f32 0.0, %v796
        %v798 = vpop.f32.mrf.mxu0
        %799 = vmatprep.mubr.bf16.mxu0 0
        %800 = vmatmul.mubr.bf16.gmra.mxu0 %v747
        %v801 = vpop.f32.mrf.mxu0
        %v802 = vadd.f32 0.0, %v801
        %v803 = vpop.f32.mrf.mxu0
        %v804 = vpop.f32.mrf.mxu0
        %v805 = vadd.f32 0.0, %v804
        %v806 = vpop.f32.mrf.mxu0
        %807 = vmatprep.mubr.bf16.mxu0 0
        %808 = vmatmul.mubr.bf16.gmra.mxu0 %v750
        %v809 = vpop.f32.mrf.mxu0
        %v810 = vadd.f32 0.0, %v809
        %v811 = vpop.f32.mrf.mxu0
        %v812 = vpop.f32.mrf.mxu0
        %v813 = vadd.f32 0.0, %v812
        %v814 = vpop.f32.mrf.mxu0
        %815 = vmatprep.mubr.bf16.mxu0 0
        %816 = vmatmul.mubr.bf16.gmra.mxu0 %v753
        %v817 = vpop.f32.mrf.mxu0
        %v818 = vadd.f32 0.0, %v817
        %v819 = vpop.f32.mrf.mxu0
        %v820 = vpop.f32.mrf.mxu0
        %v821 = vadd.f32 0.0, %v820
        %v822 = vpop.f32.mrf.mxu0
        %823 = vdwg.mxu0
        %v824 = vld [vmem:[%s466] sm:$0xff]
        %v825 = vld [vmem:[%s466 + $0x8] sm:$0xff]
        %v826 = vld [vmem:[%s466 + $0x10] sm:$0xff]
        %v827 = vld [vmem:[%s466 + $0x18] sm:$0xff]
        %v828 = vld [vmem:[%s466 + $0x20] sm:$0xff]
        %v829 = vld [vmem:[%s466 + $0x28] sm:$0xff]
        %v830 = vld [vmem:[%s466 + $0x30] sm:$0xff]
        %v831 = vld [vmem:[%s466 + $0x38] sm:$0xff]
        %v832 = vpack.c.bf16 %v825, %v824
        %v833 = vpack.c.bf16 %v827, %v826
        %v834 = vpack.c.bf16 %v829, %v828
        %v835 = vpack.c.bf16 %v831, %v830
        %v836 = vld [vmem:[%s8] sm:$0xf]
        %vm837 = vcmask 64512
        %v839 = vsel %vm837, %v832, 0
        %v842 = vsel %vm837, %v833, 0
        %v845 = vsel %vm837, %v834, 0
        %v848 = vsel %vm837, %v835, 0
        %vm850 = vcmask 1043456
        %v852 = vsel %vm850, %v836, 0
        %854 = vmatprep.subr.bf16.mxu0 0
        %855 = vmatpush1.bf16.msra.mxu0 0
        %856 = vmatprep.subr.bf16.mxu0 0
        %857 = vmatpush1.bf16.msra.mxu0 0
        %858 = vmatprep.subr.bf16.mxu0 0
        %859 = vmatpush1.bf16.msra.mxu0 0
        %860 = vmatprep.subr.bf16.mxu0 0
        %861 = vmatpush1.bf16.msra.mxu0 0
        %862 = vmatprep.subr.bf16.mxu0 0
        %863 = vmatpush1.bf16.msra.mxu0 0
        %864 = vmatprep.subr.bf16.mxu0 0
        %865 = vmatpush1.bf16.msra.mxu0 0
        %866 = vmatprep.subr.bf16.mxu0 0
        %867 = vmatpush1.bf16.msra.mxu0 0
        %868 = vmatprep.subr.bf16.mxu0 0
        %869 = vmatpush1.bf16.msra.mxu0 %v852
        %870 = vmatprep.subr.bf16.mxu0 0
        %871 = vmatpush2.bf16.msra.mxu0 0
        %872 = vmatprep.subr.bf16.mxu0 0
        %873 = vmatpush2.bf16.msra.mxu0 0
        %874 = vmatprep.subr.bf16.mxu0 0
        %875 = vmatpush2.bf16.msra.mxu0 0
        %876 = vmatprep.subr.bf16.mxu0 0
        %877 = vmatpush2.bf16.msra.mxu0 0
        %878 = vmatprep.subr.bf16.mxu0 0
        %879 = vmatpush2.bf16.msra.mxu0 0
        %880 = vmatprep.subr.bf16.mxu0 0
        %881 = vmatpush2.bf16.msra.mxu0 0
        %882 = vmatprep.subr.bf16.mxu0 0
        %883 = vmatpush2.bf16.msra.mxu0 0
        %884 = vmatprep.subr.bf16.mxu0 0
        %885 = vmatpush2.bf16.msra.mxu0 0
        %886 = vmatprep.mubr.bf16.mxu0 0
        %887 = vmatmul.mubr.bf16.gmra.mxu0 %v839
        %v888 = vpop.f32.mrf.mxu0
        %v889 = vadd.f32 0.0, %v888
        %v890 = vpop.f32.mrf.mxu0
        %v891 = vpop.f32.mrf.mxu0
        %v892 = vadd.f32 0.0, %v891
        %v893 = vpop.f32.mrf.mxu0
        %894 = vmatprep.mubr.bf16.mxu0 0
        %895 = vmatmul.mubr.bf16.gmra.mxu0 %v842
        %v896 = vpop.f32.mrf.mxu0
        %v897 = vadd.f32 0.0, %v896
        %v898 = vpop.f32.mrf.mxu0
        %v899 = vpop.f32.mrf.mxu0
        %v900 = vadd.f32 0.0, %v899
        %v901 = vpop.f32.mrf.mxu0
        %902 = vmatprep.mubr.bf16.mxu0 0
        %903 = vmatmul.mubr.bf16.gmra.mxu0 %v845
        %v904 = vpop.f32.mrf.mxu0
        %v905 = vadd.f32 0.0, %v904
        %v906 = vpop.f32.mrf.mxu0
        %v907 = vpop.f32.mrf.mxu0
        %v908 = vadd.f32 0.0, %v907
        %v909 = vpop.f32.mrf.mxu0
        %910 = vmatprep.mubr.bf16.mxu0 0
        %911 = vmatmul.mubr.bf16.gmra.mxu0 %v848
        %v912 = vpop.f32.mrf.mxu0
        %v913 = vadd.f32 0.0, %v912
        %v914 = vpop.f32.mrf.mxu0
        %v915 = vpop.f32.mrf.mxu0
        %v916 = vadd.f32 0.0, %v915
        %v917 = vpop.f32.mrf.mxu0
        %918 = vdwg.mxu0
        %v919 = vmul.f32 %v691, %v691
        %v920 = vmul.f32 %v694, %v694
        %v921 = vmul.f32 %v699, %v699
        %v922 = vmul.f32 %v702, %v702
        %v923 = vmul.f32 %v707, %v707
        %v924 = vmul.f32 %v710, %v710
        %v925 = vmul.f32 %v715, %v715
        %v926 = vmul.f32 %v718, %v718
        %v927 = vmul.f32 %v691, %v889
        %v928 = vmul.f32 %v694, %v892
        %v929 = vmul.f32 %v699, %v897
        %v930 = vmul.f32 %v702, %v900
        %v931 = vmul.f32 %v707, %v905
        %v932 = vmul.f32 %v710, %v908
        %v933 = vmul.f32 %v715, %v913
        %v934 = vmul.f32 %v718, %v916
        %v935 = vmul.f32 %v919, %v889
        %v936 = vmul.f32 %v920, %v892
        %v937 = vmul.f32 %v921, %v897
        %v938 = vmul.f32 %v922, %v900
        %v939 = vmul.f32 %v923, %v905
        %v940 = vmul.f32 %v924, %v908
        %v941 = vmul.f32 %v925, %v913
        %v942 = vmul.f32 %v926, %v916
        %v943 = vmul.f32 %v691, %v794
        %v944 = vmul.f32 %v694, %v797
        %v945 = vmul.f32 %v699, %v802
        %v946 = vmul.f32 %v702, %v805
        %v947 = vmul.f32 %v707, %v810
        %v948 = vmul.f32 %v710, %v813
        %v949 = vmul.f32 %v715, %v818
        %v950 = vmul.f32 %v718, %v821
        %v951 = vmul.f32 %v919, %v794
        %v952 = vmul.f32 %v920, %v797
        %v953 = vmul.f32 %v921, %v802
        %v954 = vmul.f32 %v922, %v805
        %v955 = vmul.f32 %v923, %v810
        %v956 = vmul.f32 %v924, %v813
        %v957 = vmul.f32 %v925, %v818
        %v958 = vmul.f32 %v926, %v821
        %v959 = vld [vmem:[%s477] sm:$0xff]
        %v960 = vld [vmem:[%s477 + $0x8] sm:$0xff]
        %v961 = vld [vmem:[%s477 + $0x10] sm:$0xff]
        %v962 = vld [vmem:[%s477 + $0x18] sm:$0xff]
        %v964 = vsel %vm643, 1.0, 0
        %966 = vmatprep.subr.mxu0 0.0
        %967 = vmatpush1.msra.mxu0 0.0
        %968 = vmatprep.subr.mxu0 0.0
        %969 = vmatpush1.msra.mxu0 0.0
        %970 = vmatprep.subr.mxu0 0.0
        %971 = vmatpush1.msra.mxu0 0.0
        %972 = vmatprep.subr.mxu0 0.0
        %973 = vmatpush1.msra.mxu0 0.0
        %974 = vmatprep.subr.mxu0 0.0
        %975 = vmatpush1.msra.mxu0 0.0
        %976 = vmatprep.subr.mxu0 0.0
        %977 = vmatpush1.msra.mxu0 0.0
        %978 = vmatprep.subr.mxu0 0.0
        %979 = vmatpush1.msra.mxu0 0.0
        %980 = vmatprep.subr.mxu0 0.0
        %981 = vmatpush1.msra.mxu0 0.0
        %982 = vmatprep.subr.mxu0 %v942
        %983 = vmatpush1.msra.mxu0 %v934
        %984 = vmatprep.subr.mxu0 %v941
        %985 = vmatpush1.msra.mxu0 %v933
        %986 = vmatprep.subr.mxu0 %v940
        %987 = vmatpush1.msra.mxu0 %v932
        %988 = vmatprep.subr.mxu0 %v939
        %989 = vmatpush1.msra.mxu0 %v931
        %990 = vmatprep.subr.mxu0 %v938
        %991 = vmatpush1.msra.mxu0 %v930
        %992 = vmatprep.subr.mxu0 %v937
        %993 = vmatpush1.msra.mxu0 %v929
        %994 = vmatprep.subr.mxu0 %v936
        %995 = vmatpush1.msra.mxu0 %v928
        %996 = vmatprep.subr.mxu0 %v935
        %997 = vmatpush1.msra.mxu0 %v927
        %998 = vmatprep.subr.mxu0 0.0
        %999 = vmatpush2.msra.mxu0 0.0
        %1000 = vmatprep.subr.mxu0 0.0
        %1001 = vmatpush2.msra.mxu0 0.0
        %1002 = vmatprep.subr.mxu0 0.0
        %1003 = vmatpush2.msra.mxu0 0.0
        %1004 = vmatprep.subr.mxu0 0.0
        %1005 = vmatpush2.msra.mxu0 0.0
        %1006 = vmatprep.subr.mxu0 0.0
        %1007 = vmatpush2.msra.mxu0 0.0
        %1008 = vmatprep.subr.mxu0 0.0
        %1009 = vmatpush2.msra.mxu0 0.0
        %1010 = vmatprep.subr.mxu0 0.0
        %1011 = vmatpush2.msra.mxu0 0.0
        %1012 = vmatprep.subr.mxu0 0.0
        %1013 = vmatpush2.msra.mxu0 0.0
        %1014 = vmatprep.subr.mxu0 0.0
        %1015 = vmatpush2.msra.mxu0 0.0
        %1016 = vmatprep.subr.mxu0 0.0
        %1017 = vmatpush2.msra.mxu0 0.0
        %1018 = vmatprep.subr.mxu0 0.0
        %1019 = vmatpush2.msra.mxu0 0.0
        %1020 = vmatprep.subr.mxu0 0.0
        %1021 = vmatpush2.msra.mxu0 0.0
        %1022 = vmatprep.subr.mxu0 0.0
        %1023 = vmatpush2.msra.mxu0 0.0
        %1024 = vmatprep.subr.mxu0 0.0
        %1025 = vmatpush2.msra.mxu0 0.0
        %1026 = vmatprep.subr.mxu0 0.0
        %1027 = vmatpush2.msra.mxu0 0.0
        %1028 = vmatprep.subr.mxu0 0.0
        %1029 = vmatpush2.msra.mxu0 0.0
        %1030 = vmatprep.mubr.f32.mxu0 0.0
        %1031 = vmatmul.mubr.f32.gmra.mxu0 %v964
        %v1032 = vpop.f32.mrf.mxu0
        %v1033 = vadd.f32 0.0, %v1032
        %v1034 = vpop.f32.mrf.mxu0
        %v1035 = vadd.f32 0.0, %v1034
        %1036 = vdwg.mxu0
        %1037 = vmatprep.subr.mxu0 0.0
        %1038 = vmatpush1.msra.mxu0 0.0
        %1039 = vmatprep.subr.mxu0 0.0
        %1040 = vmatpush1.msra.mxu0 0.0
        %1041 = vmatprep.subr.mxu0 0.0
        %1042 = vmatpush1.msra.mxu0 0.0
        %1043 = vmatprep.subr.mxu0 0.0
        %1044 = vmatpush1.msra.mxu0 0.0
        %1045 = vmatprep.subr.mxu0 0.0
        %1046 = vmatpush1.msra.mxu0 0.0
        %1047 = vmatprep.subr.mxu0 0.0
        %1048 = vmatpush1.msra.mxu0 0.0
        %1049 = vmatprep.subr.mxu0 0.0
        %1050 = vmatpush1.msra.mxu0 0.0
        %1051 = vmatprep.subr.mxu0 0.0
        %1052 = vmatpush1.msra.mxu0 0.0
        %1053 = vmatprep.subr.mxu0 %v958
        %1054 = vmatpush1.msra.mxu0 %v950
        %1055 = vmatprep.subr.mxu0 %v957
        %1056 = vmatpush1.msra.mxu0 %v949
        %1057 = vmatprep.subr.mxu0 %v956
        %1058 = vmatpush1.msra.mxu0 %v948
        %1059 = vmatprep.subr.mxu0 %v955
        %1060 = vmatpush1.msra.mxu0 %v947
        %1061 = vmatprep.subr.mxu0 %v954
        %1062 = vmatpush1.msra.mxu0 %v946
        %1063 = vmatprep.subr.mxu0 %v953
        %1064 = vmatpush1.msra.mxu0 %v945
        %1065 = vmatprep.subr.mxu0 %v952
        %1066 = vmatpush1.msra.mxu0 %v944
        %1067 = vmatprep.subr.mxu0 %v951
        %1068 = vmatpush1.msra.mxu0 %v943
        %1069 = vmatprep.subr.mxu0 0.0
        %1070 = vmatpush2.msra.mxu0 0.0
        %1071 = vmatprep.subr.mxu0 0.0
        %1072 = vmatpush2.msra.mxu0 0.0
        %1073 = vmatprep.subr.mxu0 0.0
        %1074 = vmatpush2.msra.mxu0 0.0
        %1075 = vmatprep.subr.mxu0 0.0
        %1076 = vmatpush2.msra.mxu0 0.0
        %1077 = vmatprep.subr.mxu0 0.0
        %1078 = vmatpush2.msra.mxu0 0.0
        %1079 = vmatprep.subr.mxu0 0.0
        %1080 = vmatpush2.msra.mxu0 0.0
        %1081 = vmatprep.subr.mxu0 0.0
        %1082 = vmatpush2.msra.mxu0 0.0
        %1083 = vmatprep.subr.mxu0 0.0
        %1084 = vmatpush2.msra.mxu0 0.0
        %1085 = vmatprep.subr.mxu0 0.0
        %1086 = vmatpush2.msra.mxu0 0.0
        %1087 = vmatprep.subr.mxu0 0.0
        %1088 = vmatpush2.msra.mxu0 0.0
        %1089 = vmatprep.subr.mxu0 0.0
        %1090 = vmatpush2.msra.mxu0 0.0
        %1091 = vmatprep.subr.mxu0 0.0
        %1092 = vmatpush2.msra.mxu0 0.0
        %1093 = vmatprep.subr.mxu0 0.0
        %1094 = vmatpush2.msra.mxu0 0.0
        %1095 = vmatprep.subr.mxu0 0.0
        %1096 = vmatpush2.msra.mxu0 0.0
        %1097 = vmatprep.subr.mxu0 0.0
        %1098 = vmatpush2.msra.mxu0 0.0
        %1099 = vmatprep.subr.mxu0 0.0
        %1100 = vmatpush2.msra.mxu0 0.0
        %1101 = vmatprep.mubr.f32.mxu0 0.0
        %1102 = vmatmul.mubr.f32.gmra.mxu0 %v964
        %v1103 = vpop.f32.mrf.mxu0
        %v1104 = vadd.f32 0.0, %v1103
        %v1105 = vpop.f32.mrf.mxu0
        %v1106 = vadd.f32 0.0, %v1105
        %1107 = vdwg.mxu0
        %v1108 = vadd.f32 %v959, %v1033
        %v1109 = vadd.f32 %v960, %v1035
        %v1110 = vadd.f32 %v961, %v1104
        %v1111 = vadd.f32 %v962, %v1106
        %1112 = vst [vmem:[%s477] sm:$0xff] %v1108
        %1113 = vst [vmem:[%s477 + $0x8] sm:$0xff] %v1109
        %1114 = vst [vmem:[%s477 + $0x10] sm:$0xff] %v1110
        %1115 = vst [vmem:[%s477 + $0x18] sm:$0xff] %v1111
        %s1116 = sand.u32 %s265, 1
        %s1117 = scalar_lea.sflag [#allocation3], %s1116
        %s1118 = sand.u32 %s265, 1
        %s1119 = smul.addr %s1118, 64
        %s1120 = scalar_lea.vmem [#allocation2], %s1119
        %p1121 = scmp.lt.s32.totalorder %s29, 1
        %s1122 = scalar_select %p1121, %s29, 1
        %s1123 = smul.addr %s1122, 4
        %s1124 = smul.addr %s1123, 8
        %s1125 = scalar_lea.vmem %s10, %s1124
        // Predicated region
        $region61: #{codir_forward_train.1} parent=55 // pred_check
          %p1126 = pneg %p275
        $region62: #{codir_forward_train.1} parent=55 // pred_check_branch
          %1128 = sbr.rel (%p1126) target = $region64
        $region63: #{codir_forward_train.1} parent=55 // pred_region
          %s1129 = smul.u32 %s29, 2
          %s1130 = sadd.s32 %s1129, %s30
          %s1131 = smul.u32 8, %s1130
          %s1133 = ssub.s32 1024, 1024
          %1134 = vsyncadd %s1117, %s1133
          %s1135 = smul.addr %s1131, 128
          %s1136 = scalar_lea.hbm %s9, %s1135
          %s1137 = sshll.u32 %s1120, 4
          %s1138 = int_to_ptr.vmem [resolvable:$true] %s1137
          %1143 = dma.vmem_to_hbm [thread:$0]  %s1138, 1024, %s1136, %s1117, 128, 128, 8
        $region64: #{codir_forward_train.1} parent=55 // pred_fallthru
          _
        // Predicated region
        $region65: #{codir_forward_train.1} parent=55 // pred_check
          %p1144 = pneg %p301
        $region66: #{codir_forward_train.1} parent=55 // pred_check_branch
          %1146 = sbr.rel (%p1144) target = $region68
        $region67: #{codir_forward_train.1} parent=55 // pred_region
          _
        $region68: #{codir_forward_train.1} parent=55 // pred_fallthru
          _
      $region56: #{codir_forward_train.1} parent=5 // pred_fallthru
        _
      %p1147 = scmp.le.s32.totalorder 2, %s20
      // Predicated region
      $region69: #{codir_forward_train.1} parent=5 // pred_check
        %p1148 = pneg %p1147
      $region70: #{codir_forward_train.1} parent=5 // pred_check_branch
        %1150 = sbr.rel (%p1148) target = $region72
      $region71: #{codir_forward_train.1} parent=5 // pred_region
        %s1151 = ssub.s32 %s20, 2
        // Predicated region
        $region73: #{codir_forward_train.1} parent=71 // pred_check
          %p1152 = pneg %p281
        $region74: #{codir_forward_train.1} parent=71 // pred_check_branch
          %1154 = sbr.rel (%p1152) target = $region76
        $region75: #{codir_forward_train.1} parent=71 // pred_region
          %s1155 = sand.u32 %s266, 1
          %s1156 = scalar_lea.sflag [#allocation3], %s1155
          %s1157 = sand.u32 %s266, 1
          %s1158 = smul.addr %s1157, 64
          %s1159 = scalar_lea.vmem [#allocation2], %s1158
          %1160 = dma.done %s1156, 1024
        $region76: #{codir_forward_train.1} parent=71 // pred_fallthru
          _
        // Predicated region
        $region77: #{codir_forward_train.1} parent=71 // pred_check
          %p1161 = pneg %p307
        $region78: #{codir_forward_train.1} parent=71 // pred_check_branch
          %1163 = sbr.rel (%p1161) target = $region80
        $region79: #{codir_forward_train.1} parent=71 // pred_region
          %p1164 = scmp.lt.s32.totalorder %s31, 1
          %s1165 = scalar_select %p1164, %s31, 1
          %s1166 = smul.addr %s1165, 4
          %s1167 = smul.addr %s1166, 8
          %s1168 = scalar_lea.vmem %s10, %s1167
        $region80: #{codir_forward_train.1} parent=71 // pred_fallthru
          _
      $region72: #{codir_forward_train.1} parent=5 // pred_fallthru
        _
    $region6: #{codir_forward_train.1} parent=1 // loop_footer
      %s24 = sadd.s32 1, %s20
    $region7: #{codir_forward_train.1} parent=1 // loop_footer_branch
      %19 = sbr.rel target = $region3
    $region8: #{codir_forward_train.1} parent=1 // loop_exit
      _
    %1169 = vsyncpa [#allocation3], 1
    %s1170 = scalar_lea.sflag [#allocation3], 1
    %1171 = vsyncpa %s1170, 1

</llo_original>
